<compile_context>
chip_gen: v7x
topology: tpu7x:2x2x1
jax: 0.10.0
libtpu: 0.0.40
codegen_flags: <defaults>
</compile_context>

<pallas_src>
import functools

import jax
import jax.numpy as jnp
from jax import lax
from jax.experimental import pallas as pl
from jax.experimental.pallas import tpu as pltpu


def _round_up(x, m):
    return (x + m - 1) // m * m


def _phys_tile_bytes(rows, lanes, itemsize):
    """Physical VMEM bytes of a (rows, lanes) tile (sublane/lane padding)."""
    pack = max(1, 4 // itemsize)            # rows packed per 32-bit sublane
    return _round_up(rows, 8 * pack) * _round_up(lanes, 128) * itemsize


def _vmem_budget_bytes():
    """Generation-aware total VMEM budget for this kernel."""
    phys = 64 << 20                          # conservative fallback (v7x-sized)
    try:
        info = pltpu.get_tpu_info()
        phys = int(getattr(info, "vmem_capacity_bytes", phys))
    except Exception:
        pass
    # Half of physical, capped at 48 MiB: ~48 MiB on v5e/v6e (128 MiB VMEM),
    # ~32 MiB on v7x (64 MiB VMEM).  Also used as vmem_limit_bytes.
    return min(phys // 2, 48 << 20)


def _fold_factor(bsz, d, itemsize):
    """Largest power-of-two r with r | d and r*bsz <= target Gram rows."""
    target = 128 if itemsize >= 4 else 256   # f32 needs fewer MACs per byte
    r = 1
    while r * 2 * bsz <= target and d % (r * 2) == 0:
        r *= 2
    return r


def _pick_tile(rows, dr, itemsize, block_budget_bytes):
    """Feature-tile width: a multiple of 128 lanes, or the full width."""
    pack = max(1, 4 // itemsize)
    padded_rows = _round_up(rows, 8 * pack)
    max_lanes = block_budget_bytes // max(1, padded_rows * itemsize)
    max_lanes = max(128, (max_lanes // 128) * 128)
    if dr <= max_lanes:
        return dr, 1
    return max_lanes, pl.cdiv(dr, max_lanes)


def _gram_kernel(a_ref, b_ref, ga_ref, gb_ref, *,
                 kmax, n1, n2, dr1, dr2, tk1, tk2, total_steps):
    """Grid point (c, k): accumulate the folded Gram matrices
        GA[c] += A_t @ A_t^T ,  GB[c] += B_t @ B_t^T
    for the global feature tile t = c*kmax + k (contraction over features).
    The (rows, rows) partial Grams live resident in the output refs across
    the 'arbitrary' reduction axis; core partials are summed in JAX."""
    c = pl.program_id(0)
    k = pl.program_id(1)
    t = c * kmax + k                       # global feature-tile index

    @pl.when(k == 0)
    def _():
        ga_ref[...] = jnp.zeros_like(ga_ref)
        gb_ref[...] = jnp.zeros_like(gb_ref)

    def accum(g_ref, x_ref, dr, tk, n):
        def dot_into(x):
            # f32 accumulation on the MXU.  Multiply precision is the Mosaic
            # default for the input dtype; for this self-normalized loss the
            # deviation from a Precision.HIGHEST reference is <~1e-4 relative.
            g_ref[...] += lax.dot_general(
                x, x,
                dimension_numbers=(((1,), (1,)), ((), ())),
                preferred_element_type=jnp.float32)

        def plain():
            dot_into(x_ref[...])

        ragged = (dr % tk) != 0
        if ragged:
            # Mask only the last (ragged) tile; select (not multiply) so OOB
            # padding garbage can't leak; fill is 0 in the *input* dtype.
            def masked():
                x = x_ref[...]
                col = t * tk + lax.broadcasted_iota(jnp.int32, x.shape, 1)
                dot_into(jnp.where(col < dr, x, jnp.zeros_like(x)))
            pl.when(t < n - 1)(plain)
            pl.when(t == n - 1)(masked)
        elif n == total_steps:
            plain()                        # covers every step: no guard
        else:
            pl.when(t < n)(plain)          # shorter input: skip extra steps

    accum(ga_ref, a_ref, dr1, tk1, n1)
    accum(gb_ref, b_ref, dr2, tk2, n2)


def _as_kernel_dtype(x):
    if x.dtype in (jnp.float32, jnp.bfloat16):
        return x                           # native dtype: no upcast copy
    return x.astype(jnp.float32)


def orth_loss(input1, input2, *, eps=1e-6):
    """Pallas TPU implementation of OrthLoss.forward(input1, input2)."""
    bsz = input1.shape[0]
    a = _as_kernel_dtype(input1).reshape(bsz, -1)
    b = _as_kernel_dtype(input2).reshape(bsz, -1)
    d1, d2 = a.shape[1], b.shape[1]
    its1, its2 = a.dtype.itemsize, b.dtype.itemsize

    # Fold the feature dim into rows so the Gram matmul has a healthy M = N.
    r1 = _fold_factor(bsz, d1, its1)
    r2 = _fold_factor(bsz, d2, its2)
    rows1, dr1 = bsz * r1, d1 // r1
    rows2, dr2 = bsz * r2, d2 // r2
    af = a.reshape(rows1, dr1)             # free row-major reshapes
    bf = b.reshape(rows2, dr2)

    # VMEM budget: 2 inputs x 2 pipeline buffers + 2 (double-buffered) Gram
    # outputs + headroom, with explicit sublane/lane padding.
    budget = _vmem_budget_bytes()
    gram_bytes = 2 * (_phys_tile_bytes(rows1, rows1, 4) +
                      _phys_tile_bytes(rows2, rows2, 4))
    per_block = max(1 << 20, (budget - gram_bytes - (2 << 20)) // 4)

    tk1, n1 = _pick_tile(rows1, dr1, its1, per_block)
    tk2, n2 = _pick_tile(rows2, dr2, its2, per_block)

    grid_n = max(n1, n2)
    num_cores = 2 if grid_n >= 2 else 1    # v7x: split reduction over both TCs
    kmax = pl.cdiv(grid_n, num_cores)
    total_steps = num_cores * kmax

    def in_map(n):
        if n == total_steps:
            return lambda c, k: (0, c * kmax + k)
        # Shorter / exhausted input: clamp the block index (repeated index
        # => no re-DMA); the kernel skips the accumulation via pl.when.
        return lambda c, k: (0, jnp.minimum(c * kmax + k, n - 1))

    kernel = functools.partial(
        _gram_kernel,
        kmax=kmax, n1=n1, n2=n2, dr1=dr1, dr2=dr2, tk1=tk1, tk2=tk2,
        total_steps=total_steps)

    gfa, gfb = pl.pallas_call(
        kernel,
        out_shape=(
            jax.ShapeDtypeStruct((num_cores, rows1, rows1), jnp.float32),
            jax.ShapeDtypeStruct((num_cores, rows2, rows2), jnp.float32),
        ),
        grid_spec=pltpu.PrefetchScalarGridSpec(
            num_scalar_prefetch=0,
            grid=(num_cores, kmax),
            in_specs=[
                pl.BlockSpec((rows1, tk1), in_map(n1)),
                pl.BlockSpec((rows2, tk2), in_map(n2)),
            ],
            out_specs=[
                pl.BlockSpec((None, rows1, rows1), lambda c, k: (c, 0, 0)),
                pl.BlockSpec((None, rows2, rows2), lambda c, k: (c, 0, 0)),
            ],
        ),
        compiler_params=pltpu.CompilerParams(
            dimension_semantics=("parallel", "arbitrary"),
            vmem_limit_bytes=int(budget),
        ),
    )(af, bf)

    # Tiny JAX epilogue (Grams are at most ~256x256): combine core partials,
    # un-fold (trace of each r x r sub-block), normalize rows by the L2 norms
    # from the Gram diagonal, and contract the two (B, B) matrices.
    ga = jnp.trace(gfa.sum(axis=0).reshape(bsz, r1, bsz, r1), axis1=1, axis2=3)
    gb = jnp.trace(gfb.sum(axis=0).reshape(bsz, r2, bsz, r2), axis1=1, axis2=3)
    na = jnp.sqrt(jnp.diagonal(ga)) + eps
    nb = jnp.sqrt(jnp.diagonal(gb)) + eps
    ga_n = ga / (na[:, None] * na[None, :])
    gb_n = gb / (nb[:, None] * nb[None, :])
    return jnp.sum(ga_n * gb_n) / (float(d1) * float(d2))


def _orth_loss_ref(input1, input2):
    """Pure-JAX reference matching the PyTorch forward exactly."""
    bsz = input1.shape[0]
    a = input1.reshape(bsz, -1).astype(jnp.float32)
    b = input2.reshape(bsz, -1).astype(jnp.float32)
    an = jnp.linalg.norm(a, axis=1, keepdims=True)
    bn = jnp.linalg.norm(b, axis=1, keepdims=True)
    a = a / (an + 1e-6)
    b = b / (bn + 1e-6)
    m = jnp.dot(a.T, b, precision=lax.Precision.HIGHEST)
    return jnp.mean(m ** 2)


if __name__ == "__main__":
    key = jax.random.PRNGKey(0)
    k1, k2 = jax.random.split(key)
    # Small NCHW feature maps from two "modalities".
    x1 = jax.random.normal(k1, (2, 4, 16, 16), dtype=jnp.float32)
    x2 = jax.random.normal(k2, (2, 4, 16, 16), dtype=jnp.float32)

    loss = jax.block_until_ready(orth_loss(x1, x2))
    ref = _orth_loss_ref(x1, x2)

    # Kernel accumulates in f32; MXU multiply precision is the Mosaic default,
    # so allow a small deviation vs the Precision.HIGHEST reference.
    assert jnp.allclose(loss, ref, rtol=2e-3, atol=1e-9), (loss, ref)
    print("KERNEL_OK")
</pallas_src>

<mosaic_0001>
module attributes {stable_mosaic.version = 11 : i64} {
  func.func @_gram_kernel(%arg0: i32, %arg1: i32, %arg2: memref<128x16xf32, #tpu.memory_space<vmem>>, %arg3: memref<128x16xf32, #tpu.memory_space<vmem>>, %arg4: memref<1x128x128xf32, #tpu.memory_space<vmem>>, %arg5: memref<1x128x128xf32, #tpu.memory_space<vmem>>) attributes {dimension_semantics = [#tpu.dimension_semantics<parallel>, #tpu.dimension_semantics<arbitrary>], iteration_bounds = array<i64: 1, 1>, scalar_prefetch = 0 : i64, scratch_operands = 0 : i64, tpu.core_type = #tpu.core_type<tc>, window_params = [{transform_indices = @transform_0, window_bounds = array<i64: 128, 16>}, {transform_indices = @transform_1, window_bounds = array<i64: 128, 16>}, {transform_indices = @transform_2, window_bounds = array<i64: 1, 128, 128>}, {transform_indices = @transform_3, window_bounds = array<i64: 1, 128, 128>}]} {
    %c0_i32 = arith.constant 0 : i32
    %0 = arith.cmpi eq, %arg1, %c0_i32 : i32
    %1 = arith.extui %0 : i1 to i32
    %c0_i32_0 = arith.constant 0 : i32
    %2 = arith.cmpi ne, %1, %c0_i32_0 : i32
    scf.if %2 {
      %cst_17 = arith.constant 0.000000e+00 : f32
      %19 = vector.broadcast %cst_17 : f32 to vector<128x128xf32>
      %c0_18 = arith.constant 0 : index
      %c0_19 = arith.constant 0 : index
      %c0_20 = arith.constant 0 : index
      %20 = vector.load %arg4[%c0_18, %c0_19, %c0_20] : memref<1x128x128xf32, #tpu.memory_space<vmem>>, vector<1x128x128xf32>
      %21 = vector.shape_cast %20 : vector<1x128x128xf32> to vector<128x128xf32>
      %22 = vector.shape_cast %19 : vector<128x128xf32> to vector<1x128x128xf32>
      tpu.vector_store %arg4[%c0_18, %c0_19, %c0_20], %22 {strides = array<i32>} : memref<1x128x128xf32, #tpu.memory_space<vmem>>, vector<1x128x128xf32>,
      %cst_21 = arith.constant 0.000000e+00 : f32
      %23 = vector.broadcast %cst_21 : f32 to vector<128x128xf32>
      %c0_22 = arith.constant 0 : index
      %c0_23 = arith.constant 0 : index
      %c0_24 = arith.constant 0 : index
      %24 = vector.load %arg5[%c0_22, %c0_23, %c0_24] : memref<1x128x128xf32, #tpu.memory_space<vmem>>, vector<1x128x128xf32>
      %25 = vector.shape_cast %24 : vector<1x128x128xf32> to vector<128x128xf32>
      %26 = vector.shape_cast %23 : vector<128x128xf32> to vector<1x128x128xf32>
      tpu.vector_store %arg5[%c0_22, %c0_23, %c0_24], %26 {strides = array<i32>} : memref<1x128x128xf32, #tpu.memory_space<vmem>>, vector<1x128x128xf32>,
    } else {
    }
    %c0 = arith.constant 0 : index
    %c0_1 = arith.constant 0 : index
    %3 = vector.load %arg2[%c0, %c0_1] : memref<128x16xf32, #tpu.memory_space<vmem>>, vector<128x16xf32>
    %c0_2 = arith.constant 0 : index
    %c0_3 = arith.constant 0 : index
    %c0_4 = arith.constant 0 : index
    %4 = vector.load %arg4[%c0_2, %c0_3, %c0_4] : memref<1x128x128xf32, #tpu.memory_space<vmem>>, vector<1x128x128xf32>
    %5 = vector.shape_cast %4 : vector<1x128x128xf32> to vector<128x128xf32>
    %cst = arith.constant dense<0.000000e+00> : vector<128x128xf32>
    %6 = tpu.matmul %3, %3, %cst {dimension_numbers = #tpu.dot_dimension_numbers<[1], [1], [0], [0], [0, 0, 1, 0], [], []>} : vector<128x16xf32>, vector<128x16xf32>, vector<128x128xf32> -> vector<128x128xf32>
    %7 = arith.addf %5, %6 : vector<128x128xf32>
    %c0_5 = arith.constant 0 : index
    %c0_6 = arith.constant 0 : index
    %c0_7 = arith.constant 0 : index
    %8 = vector.load %arg4[%c0_5, %c0_6, %c0_7] : memref<1x128x128xf32, #tpu.memory_space<vmem>>, vector<1x128x128xf32>
    %9 = vector.shape_cast %8 : vector<1x128x128xf32> to vector<128x128xf32>
    %10 = vector.shape_cast %7 : vector<128x128xf32> to vector<1x128x128xf32>
    tpu.vector_store %arg4[%c0_5, %c0_6, %c0_7], %10 {strides = array<i32>} : memref<1x128x128xf32, #tpu.memory_space<vmem>>, vector<1x128x128xf32>,
    %c0_8 = arith.constant 0 : index
    %c0_9 = arith.constant 0 : index
    %11 = vector.load %arg3[%c0_8, %c0_9] : memref<128x16xf32, #tpu.memory_space<vmem>>, vector<128x16xf32>
    %c0_10 = arith.constant 0 : index
    %c0_11 = arith.constant 0 : index
    %c0_12 = arith.constant 0 : index
    %12 = vector.load %arg5[%c0_10, %c0_11, %c0_12] : memref<1x128x128xf32, #tpu.memory_space<vmem>>, vector<1x128x128xf32>
    %13 = vector.shape_cast %12 : vector<1x128x128xf32> to vector<128x128xf32>
    %cst_13 = arith.constant dense<0.000000e+00> : vector<128x128xf32>
    %14 = tpu.matmul %11, %11, %cst_13 {dimension_numbers = #tpu.dot_dimension_numbers<[1], [1], [0], [0], [0, 0, 1, 0], [], []>} : vector<128x16xf32>, vector<128x16xf32>, vector<128x128xf32> -> vector<128x128xf32>
    %15 = arith.addf %13, %14 : vector<128x128xf32>
    %c0_14 = arith.constant 0 : index
    %c0_15 = arith.constant 0 : index
    %c0_16 = arith.constant 0 : index
    %16 = vector.load %arg5[%c0_14, %c0_15, %c0_16] : memref<1x128x128xf32, #tpu.memory_space<vmem>>, vector<1x128x128xf32>
    %17 = vector.shape_cast %16 : vector<1x128x128xf32> to vector<128x128xf32>
    %18 = vector.shape_cast %15 : vector<128x128xf32> to vector<1x128x128xf32>
    tpu.vector_store %arg5[%c0_14, %c0_15, %c0_16], %18 {strides = array<i32>} : memref<1x128x128xf32, #tpu.memory_space<vmem>>, vector<1x128x128xf32>,
    return
  }
  func.func @transform_0(%arg0: i32, %arg1: i32) -> (i32, i32) {
    %c1_i32 = arith.constant 1 : i32
    %0 = arith.muli %arg0, %c1_i32 : i32
    %1 = arith.addi %0, %arg1 : i32
    %c0_i32 = arith.constant 0 : i32
    %c0_i32_0 = arith.constant 0 : i32
    return %c0_i32, %1 : i32, i32
  }
  func.func @transform_1(%arg0: i32, %arg1: i32) -> (i32, i32) {
    %c1_i32 = arith.constant 1 : i32
    %0 = arith.muli %arg0, %c1_i32 : i32
    %1 = arith.addi %0, %arg1 : i32
    %c0_i32 = arith.constant 0 : i32
    %c0_i32_0 = arith.constant 0 : i32
    return %c0_i32, %1 : i32, i32
  }
  func.func @transform_2(%arg0: i32, %arg1: i32) -> (i32, i32, i32) {
    %c0_i32 = arith.constant 0 : i32
    %c0_i32_0 = arith.constant 0 : i32
    %c0_i32_1 = arith.constant 0 : i32
    return %arg0, %c0_i32, %c0_i32_0 : i32, i32, i32
  }
  func.func @transform_3(%arg0: i32, %arg1: i32) -> (i32, i32, i32) {
    %c0_i32 = arith.constant 0 : i32
    %c0_i32_0 = arith.constant 0 : i32
    %c0_i32_1 = arith.constant 0 : i32
    return %arg0, %c0_i32, %c0_i32_0 : i32, i32, i32
  }
}

</mosaic_0001>

<llo_original>
// kernel: tpu_custom_call.1
$region0: #{tpu_custom_call.1}
  #allocation0 [shape = 'u32[]', space=smem, size = 0x4, offset = 0x4, fixed_abs, tag = 'smem constant byte address 0x4 - core index']
  #allocation1 [shape = 'u32[144,128]{1,0:T(1,128)}', space=vmem, size = 0x12000, scoped, tag = 'internal scratch']
  %s0 = inlined_call_operand.vmem [shape: f32[128,16], index: 0, kind: input, shape index: {}]
  %s1 = inlined_call_operand.vmem [shape: f32[128,16], index: 1, kind: input, shape index: {}]
  %s2 = inlined_call_operand.hbm [shape: f32[1,128,128], index: 2, kind: output, shape index: {0}]
  %s3 = inlined_call_operand.hbm [shape: f32[1,128,128], index: 3, kind: output, shape index: {1}]
  %4 = xla_tuple %s2, %s3
  %s5 = sld [smem:[#allocation0]]
  $region30: #{tpu_custom_call.1} parent=0
    _
  %s7 = ssub.s32 1, %s5
  %s8 = scalar_select 0, %s7, %s5
  $region1: #{tpu_custom_call.1} parent=0
    #allocation2 [shape = 'u8[65536]{0}', space=vmem, size = 0x10000, scoped, tag = 'output window, operand 0, single buffered']
    #allocation3 [shape = 's32[1]{0}', space=sflag, size = 0x4, scoped, tag = 'scoped memory for tpu_custom_call.1']
    #allocation4 [shape = 'u8[65536]{0}', space=vmem, size = 0x10000, scoped, tag = 'output window, operand 1, single buffered']
    #allocation5 [shape = 's32[1]{0}', space=sflag, size = 0x4, scoped, tag = 'scoped memory for tpu_custom_call.1']
    %9 = vsyncpa [#allocation3], 0
    %10 = vsyncpa [#allocation5], 0
    // Predicated region
    $region2: #{tpu_custom_call.1} parent=1 // pred_check
      _
    $region3: #{tpu_custom_call.1} parent=1 // pred_check_branch
      %12 = sbr.rel (0) target = $region5
    $region4: #{tpu_custom_call.1} parent=1 // pred_region
      %s13 = sadd.s32 0, 0
      %p14 = scmp.lt.s32.totalorder %s13, 0
      %s15 = scalar_select %p14, %s13, 0
      %s16 = smul.addr %s15, 8
      %s17 = scalar_lea.vmem %s0, %s16
      %s18 = sadd.s32 0, 0
    $region5: #{tpu_custom_call.1} parent=1 // pred_fallthru
      _
    // Predicated region
    $region6: #{tpu_custom_call.1} parent=1 // pred_check
      _
    $region7: #{tpu_custom_call.1} parent=1 // pred_check_branch
      %20 = sbr.rel (0) target = $region9
    $region8: #{tpu_custom_call.1} parent=1 // pred_region
      %s21 = sadd.s32 0, 0
      %p22 = scmp.lt.s32.totalorder %s21, 0
      %s23 = scalar_select %p22, %s21, 0
      %s24 = smul.addr %s23, 8
      %s25 = scalar_lea.vmem %s1, %s24
      %s26 = sadd.s32 0, 0
    $region9: #{tpu_custom_call.1} parent=1 // pred_fallthru
      _
    %s27 = sadd.s32 0, 0
    %p28 = scmp.lt.s32.totalorder %s27, 0
    %s29 = scalar_select %p28, %s27, 0
    %s30 = smul.addr %s29, 8
    %s31 = scalar_lea.vmem %s0, %s30
    %s32 = sadd.s32 0, 0
    %p33 = scmp.lt.s32.totalorder %s32, 0
    %s34 = scalar_select %p33, %s32, 0
    %s35 = smul.addr %s34, 8
    %s36 = scalar_lea.vmem %s1, %s35
    %s37 = sadd.s32 0, 0
    %p38 = scmp.lt.s32.totalorder %s37, 0
    %s39 = scalar_select %p38, %s37, 0
    %s40 = smul.addr %s39, 8
    %s41 = scalar_lea.vmem %s0, %s40
    %s42 = sadd.s32 0, 0
    %s43 = sadd.s32 0, 0
    %p44 = scmp.lt.s32.totalorder %s43, 0
    %s45 = scalar_select %p44, %s43, 0
    %s46 = smul.addr %s45, 8
    %s47 = scalar_lea.vmem %s1, %s46
    %s48 = sadd.s32 0, 0
    %p49 = scmp.eq.s32.totalorder 0, 0
    // Predicated region
    $region10: #{tpu_custom_call.1} parent=1 // pred_check
      %p50 = pneg %p49
    $region11: #{tpu_custom_call.1} parent=1 // pred_check_branch
      %52 = sbr.rel (%p50) target = $region13
    $region12: #{tpu_custom_call.1} parent=1 // pred_region
      %53 = vst [vmem:[#allocation2] sm:$0xff] 0.0
      %54 = vst [vmem:[#allocation2 + $0x8] sm:$0xff] 0.0
      %55 = vst [vmem:[#allocation2 + $0x10] sm:$0xff] 0.0
      %56 = vst [vmem:[#allocation2 + $0x18] sm:$0xff] 0.0
      %57 = vst [vmem:[#allocation2 + $0x20] sm:$0xff] 0.0
      %58 = vst [vmem:[#allocation2 + $0x28] sm:$0xff] 0.0
      %59 = vst [vmem:[#allocation2 + $0x30] sm:$0xff] 0.0
      %60 = vst [vmem:[#allocation2 + $0x38] sm:$0xff] 0.0
      %61 = vst [vmem:[#allocation2 + $0x40] sm:$0xff] 0.0
      %62 = vst [vmem:[#allocation2 + $0x48] sm:$0xff] 0.0
      %63 = vst [vmem:[#allocation2 + $0x50] sm:$0xff] 0.0
      %64 = vst [vmem:[#allocation2 + $0x58] sm:$0xff] 0.0
      %65 = vst [vmem:[#allocation2 + $0x60] sm:$0xff] 0.0
      %66 = vst [vmem:[#allocation2 + $0x68] sm:$0xff] 0.0
      %67 = vst [vmem:[#allocation2 + $0x70] sm:$0xff] 0.0
      %68 = vst [vmem:[#allocation2 + $0x78] sm:$0xff] 0.0
      %69 = vst [vmem:[#allocation4] sm:$0xff] 0.0
      %70 = vst [vmem:[#allocation4 + $0x8] sm:$0xff] 0.0
      %71 = vst [vmem:[#allocation4 + $0x10] sm:$0xff] 0.0
      %72 = vst [vmem:[#allocation4 + $0x18] sm:$0xff] 0.0
      %73 = vst [vmem:[#allocation4 + $0x20] sm:$0xff] 0.0
      %74 = vst [vmem:[#allocation4 + $0x28] sm:$0xff] 0.0
      %75 = vst [vmem:[#allocation4 + $0x30] sm:$0xff] 0.0
      %76 = vst [vmem:[#allocation4 + $0x38] sm:$0xff] 0.0
      %77 = vst [vmem:[#allocation4 + $0x40] sm:$0xff] 0.0
      %78 = vst [vmem:[#allocation4 + $0x48] sm:$0xff] 0.0
      %79 = vst [vmem:[#allocation4 + $0x50] sm:$0xff] 0.0
      %80 = vst [vmem:[#allocation4 + $0x58] sm:$0xff] 0.0
      %81 = vst [vmem:[#allocation4 + $0x60] sm:$0xff] 0.0
      %82 = vst [vmem:[#allocation4 + $0x68] sm:$0xff] 0.0
      %83 = vst [vmem:[#allocation4 + $0x70] sm:$0xff] 0.0
      %84 = vst [vmem:[#allocation4 + $0x78] sm:$0xff] 0.0
    $region13: #{tpu_custom_call.1} parent=1 // pred_fallthru
      _
    %v85 = vld [vmem:[%s41] sm:$0xff]
    %v86 = vld [vmem:[%s41 + $0x8] sm:$0xff]
    %v87 = vld [vmem:[%s41 + $0x10] sm:$0xff]
    %v88 = vld [vmem:[%s41 + $0x18] sm:$0xff]
    %v89 = vld [vmem:[%s41 + $0x20] sm:$0xff]
    %v90 = vld [vmem:[%s41 + $0x28] sm:$0xff]
    %v91 = vld [vmem:[%s41 + $0x30] sm:$0xff]
    %v92 = vld [vmem:[%s41 + $0x38] sm:$0xff]
    %v93 = vld [vmem:[%s41 + $0x40] sm:$0xff]
    %v94 = vld [vmem:[%s41 + $0x48] sm:$0xff]
    %v95 = vld [vmem:[%s41 + $0x50] sm:$0xff]
    %v96 = vld [vmem:[%s41 + $0x58] sm:$0xff]
    %v97 = vld [vmem:[%s41 + $0x60] sm:$0xff]
    %v98 = vld [vmem:[%s41 + $0x68] sm:$0xff]
    %v99 = vld [vmem:[%s41 + $0x70] sm:$0xff]
    %v100 = vld [vmem:[%s41 + $0x78] sm:$0xff]
    %v101 = vld [vmem:[#allocation2] sm:$0xff]
    %v102 = vld [vmem:[#allocation2 + $0x8] sm:$0xff]
    %v103 = vld [vmem:[#allocation2 + $0x10] sm:$0xff]
    %v104 = vld [vmem:[#allocation2 + $0x18] sm:$0xff]
    %v105 = vld [vmem:[#allocation2 + $0x20] sm:$0xff]
    %v106 = vld [vmem:[#allocation2 + $0x28] sm:$0xff]
    %v107 = vld [vmem:[#allocation2 + $0x30] sm:$0xff]
    %v108 = vld [vmem:[#allocation2 + $0x38] sm:$0xff]
    %v109 = vld [vmem:[#allocation2 + $0x40] sm:$0xff]
    %v110 = vld [vmem:[#allocation2 + $0x48] sm:$0xff]
    %v111 = vld [vmem:[#allocation2 + $0x50] sm:$0xff]
    %v112 = vld [vmem:[#allocation2 + $0x58] sm:$0xff]
    %v113 = vld [vmem:[#allocation2 + $0x60] sm:$0xff]
    %v114 = vld [vmem:[#allocation2 + $0x68] sm:$0xff]
    %v115 = vld [vmem:[#allocation2 + $0x70] sm:$0xff]
    %v116 = vld [vmem:[#allocation2 + $0x78] sm:$0xff]
    %vm117 = vcmask 130048
    %v119 = vsel %vm117, %v85, 0
    %v122 = vsel %vm117, %v86, 0
    %v125 = vsel %vm117, %v87, 0
    %v128 = vsel %vm117, %v88, 0
    %v131 = vsel %vm117, %v89, 0
    %v134 = vsel %vm117, %v90, 0
    %v137 = vsel %vm117, %v91, 0
    %v140 = vsel %vm117, %v92, 0
    %v143 = vsel %vm117, %v93, 0
    %v146 = vsel %vm117, %v94, 0
    %v149 = vsel %vm117, %v95, 0
    %v152 = vsel %vm117, %v96, 0
    %v155 = vsel %vm117, %v97, 0
    %v158 = vsel %vm117, %v98, 0
    %v161 = vsel %vm117, %v99, 0
    %v164 = vsel %vm117, %v100, 0
    %166 = vmatprep.subr.mxu0 0.0
    %167 = vmatpush1.xpose.msra.mxu0 %v119
    %168 = vmatprep.subr.mxu0 0.0
    %169 = vmatpush1.xpose.msra.mxu0 %v122
    %170 = vmatprep.subr.mxu0 0.0
    %171 = vmatpush1.xpose.msra.mxu0 %v125
    %172 = vmatprep.subr.mxu0 0.0
    %173 = vmatpush1.xpose.msra.mxu0 %v128
    %174 = vmatprep.subr.mxu0 0.0
    %175 = vmatpush1.xpose.msra.mxu0 %v131
    %176 = vmatprep.subr.mxu0 0.0
    %177 = vmatpush1.xpose.msra.mxu0 %v134
    %178 = vmatprep.subr.mxu0 0.0
    %179 = vmatpush1.xpose.msra.mxu0 %v137
    %180 = vmatprep.subr.mxu0 0.0
    %181 = vmatpush1.xpose.msra.mxu0 %v140
    %182 = vmatprep.subr.mxu0 0.0
    %183 = vmatpush1.xpose.msra.mxu0 %v143
    %184 = vmatprep.subr.mxu0 0.0
    %185 = vmatpush1.xpose.msra.mxu0 %v146
    %186 = vmatprep.subr.mxu0 0.0
    %187 = vmatpush1.xpose.msra.mxu0 %v149
    %188 = vmatprep.subr.mxu0 0.0
    %189 = vmatpush1.xpose.msra.mxu0 %v152
    %190 = vmatprep.subr.mxu0 0.0
    %191 = vmatpush1.xpose.msra.mxu0 %v155
    %192 = vmatprep.subr.mxu0 0.0
    %193 = vmatpush1.xpose.msra.mxu0 %v158
    %194 = vmatprep.subr.mxu0 0.0
    %195 = vmatpush1.xpose.msra.mxu0 %v161
    %196 = vmatprep.subr.mxu0 0.0
    %197 = vmatpush1.xpose.msra.mxu0 %v164
    %198 = vmatprep.subr.mxu0 0.0
    %199 = vmatpush1.xpose.msra.mxu0 0.0
    %200 = vmatprep.subr.mxu0 0.0
    %201 = vmatpush1.xpose.msra.mxu0 0.0
    %202 = vmatprep.subr.mxu0 0.0
    %203 = vmatpush1.xpose.msra.mxu0 0.0
    %204 = vmatprep.subr.mxu0 0.0
    %205 = vmatpush1.xpose.msra.mxu0 0.0
    %206 = vmatprep.subr.mxu0 0.0
    %207 = vmatpush1.xpose.msra.mxu0 0.0
    %208 = vmatprep.subr.mxu0 0.0
    %209 = vmatpush1.xpose.msra.mxu0 0.0
    %210 = vmatprep.subr.mxu0 0.0
    %211 = vmatpush1.xpose.msra.mxu0 0.0
    %212 = vmatprep.subr.mxu0 0.0
    %213 = vmatpush1.xpose.msra.mxu0 0.0
    %214 = vmatprep.subr.mxu0 0.0
    %215 = vmatpush1.xpose.msra.mxu0 0.0
    %216 = vmatprep.subr.mxu0 0.0
    %217 = vmatpush1.xpose.msra.mxu0 0.0
    %218 = vmatprep.subr.mxu0 0.0
    %219 = vmatpush1.xpose.msra.mxu0 0.0
    %220 = vmatprep.subr.mxu0 0.0
    %221 = vmatpush1.xpose.msra.mxu0 0.0
    %222 = vmatprep.subr.mxu0 0.0
    %223 = vmatpush1.xpose.msra.mxu0 0.0
    %224 = vmatprep.subr.mxu0 0.0
    %225 = vmatpush1.xpose.msra.mxu0 0.0
    %226 = vmatprep.subr.mxu0 0.0
    %227 = vmatpush1.xpose.msra.mxu0 0.0
    %228 = vmatprep.subr.mxu0 0.0
    %229 = vmatpush1.xpose.msra.mxu0 0.0
    %230 = vmatprep.mubr.f32.mxu0 0.0
    %231 = vmatmul.mubr.f32.gmra.mrb[0].mxu0 %v119
    %v232 = vpop.f32.mrb[0].mxu0
    %v233 = vadd.f32 0.0, %v232
    %v234 = vpop.f32.mrb[0].mxu0
    %235 = vmatprep.mubr.f32.mxu0 0.0
    %236 = vmatmul.mubr.f32.gmra.mrb[0].mxu0 %v122
    %v237 = vpop.f32.mrb[0].mxu0
    %v238 = vadd.f32 0.0, %v237
    %v239 = vpop.f32.mrb[0].mxu0
    %240 = vmatprep.mubr.f32.mxu0 0.0
    %241 = vmatmul.mubr.f32.gmra.mrb[0].mxu0 %v125
    %v242 = vpop.f32.mrb[0].mxu0
    %v243 = vadd.f32 0.0, %v242
    %v244 = vpop.f32.mrb[0].mxu0
    %245 = vmatprep.mubr.f32.mxu0 0.0
    %246 = vmatmul.mubr.f32.gmra.mrb[0].mxu0 %v128
    %v247 = vpop.f32.mrb[0].mxu0
    %v248 = vadd.f32 0.0, %v247
    %v249 = vpop.f32.mrb[0].mxu0
    %250 = vmatprep.mubr.f32.mxu0 0.0
    %251 = vmatmul.mubr.f32.gmra.mrb[0].mxu0 %v131
    %v252 = vpop.f32.mrb[0].mxu0
    %v253 = vadd.f32 0.0, %v252
    %v254 = vpop.f32.mrb[0].mxu0
    %255 = vmatprep.mubr.f32.mxu0 0.0
    %256 = vmatmul.mubr.f32.gmra.mrb[0].mxu0 %v134
    %v257 = vpop.f32.mrb[0].mxu0
    %v258 = vadd.f32 0.0, %v257
    %v259 = vpop.f32.mrb[0].mxu0
    %260 = vmatprep.mubr.f32.mxu0 0.0
    %261 = vmatmul.mubr.f32.gmra.mrb[0].mxu0 %v137
    %v262 = vpop.f32.mrb[0].mxu0
    %v263 = vadd.f32 0.0, %v262
    %v264 = vpop.f32.mrb[0].mxu0
    %265 = vmatprep.mubr.f32.mxu0 0.0
    %266 = vmatmul.mubr.f32.gmra.mrb[0].mxu0 %v140
    %v267 = vpop.f32.mrb[0].mxu0
    %v268 = vadd.f32 0.0, %v267
    %v269 = vpop.f32.mrb[0].mxu0
    %270 = vmatprep.mubr.f32.mxu0 0.0
    %271 = vmatmul.mubr.f32.gmra.mrb[0].mxu0 %v143
    %v272 = vpop.f32.mrb[0].mxu0
    %v273 = vadd.f32 0.0, %v272
    %v274 = vpop.f32.mrb[0].mxu0
    %275 = vmatprep.mubr.f32.mxu0 0.0
    %276 = vmatmul.mubr.f32.gmra.mrb[0].mxu0 %v146
    %v277 = vpop.f32.mrb[0].mxu0
    %v278 = vadd.f32 0.0, %v277
    %v279 = vpop.f32.mrb[0].mxu0
    %280 = vmatprep.mubr.f32.mxu0 0.0
    %281 = vmatmul.mubr.f32.gmra.mrb[0].mxu0 %v149
    %v282 = vpop.f32.mrb[0].mxu0
    %v283 = vadd.f32 0.0, %v282
    %v284 = vpop.f32.mrb[0].mxu0
    %285 = vmatprep.mubr.f32.mxu0 0.0
    %286 = vmatmul.mubr.f32.gmra.mrb[0].mxu0 %v152
    %v287 = vpop.f32.mrb[0].mxu0
    %v288 = vadd.f32 0.0, %v287
    %v289 = vpop.f32.mrb[0].mxu0
    %290 = vmatprep.mubr.f32.mxu0 0.0
    %291 = vmatmul.mubr.f32.gmra.mrb[0].mxu0 %v155
    %v292 = vpop.f32.mrb[0].mxu0
    %v293 = vadd.f32 0.0, %v292
    %v294 = vpop.f32.mrb[0].mxu0
    %295 = vmatprep.mubr.f32.mxu0 0.0
    %296 = vmatmul.mubr.f32.gmra.mrb[0].mxu0 %v158
    %v297 = vpop.f32.mrb[0].mxu0
    %v298 = vadd.f32 0.0, %v297
    %v299 = vpop.f32.mrb[0].mxu0
    %300 = vmatprep.mubr.f32.mxu0 0.0
    %301 = vmatmul.mubr.f32.gmra.mrb[0].mxu0 %v161
    %v302 = vpop.f32.mrb[0].mxu0
    %v303 = vadd.f32 0.0, %v302
    %v304 = vpop.f32.mrb[0].mxu0
    %305 = vmatprep.mubr.f32.mxu0 0.0
    %306 = vmatmul.mubr.f32.gmra.mrb[0].mxu0 %v164
    %v307 = vpop.f32.mrb[0].mxu0
    %v308 = vadd.f32 0.0, %v307
    %v309 = vpop.f32.mrb[0].mxu0
    %310 = vdwg.mxu0
    %v311 = vadd.f32 %v101, %v233
    %v312 = vadd.f32 %v102, %v238
    %v313 = vadd.f32 %v103, %v243
    %v314 = vadd.f32 %v104, %v248
    %v315 = vadd.f32 %v105, %v253
    %v316 = vadd.f32 %v106, %v258
    %v317 = vadd.f32 %v107, %v263
    %v318 = vadd.f32 %v108, %v268
    %v319 = vadd.f32 %v109, %v273
    %v320 = vadd.f32 %v110, %v278
    %v321 = vadd.f32 %v111, %v283
    %v322 = vadd.f32 %v112, %v288
    %v323 = vadd.f32 %v113, %v293
    %v324 = vadd.f32 %v114, %v298
    %v325 = vadd.f32 %v115, %v303
    %v326 = vadd.f32 %v116, %v308
    %327 = vst [vmem:[#allocation2] sm:$0xff] %v311
    %328 = vst [vmem:[#allocation2 + $0x8] sm:$0xff] %v312
    %329 = vst [vmem:[#allocation2 + $0x10] sm:$0xff] %v313
    %330 = vst [vmem:[#allocation2 + $0x18] sm:$0xff] %v314
    %331 = vst [vmem:[#allocation2 + $0x20] sm:$0xff] %v315
    %332 = vst [vmem:[#allocation2 + $0x28] sm:$0xff] %v316
    %333 = vst [vmem:[#allocation2 + $0x30] sm:$0xff] %v317
    %334 = vst [vmem:[#allocation2 + $0x38] sm:$0xff] %v318
    %335 = vst [vmem:[#allocation2 + $0x40] sm:$0xff] %v319
    %336 = vst [vmem:[#allocation2 + $0x48] sm:$0xff] %v320
    %337 = vst [vmem:[#allocation2 + $0x50] sm:$0xff] %v321
    %338 = vst [vmem:[#allocation2 + $0x58] sm:$0xff] %v322
    %339 = vst [vmem:[#allocation2 + $0x60] sm:$0xff] %v323
    %340 = vst [vmem:[#allocation2 + $0x68] sm:$0xff] %v324
    %341 = vst [vmem:[#allocation2 + $0x70] sm:$0xff] %v325
    %342 = vst [vmem:[#allocation2 + $0x78] sm:$0xff] %v326
    %v343 = vld [vmem:[%s47] sm:$0xff]
    %v344 = vld [vmem:[%s47 + $0x8] sm:$0xff]
    %v345 = vld [vmem:[%s47 + $0x10] sm:$0xff]
    %v346 = vld [vmem:[%s47 + $0x18] sm:$0xff]
    %v347 = vld [vmem:[%s47 + $0x20] sm:$0xff]
    %v348 = vld [vmem:[%s47 + $0x28] sm:$0xff]
    %v349 = vld [vmem:[%s47 + $0x30] sm:$0xff]
    %v350 = vld [vmem:[%s47 + $0x38] sm:$0xff]
    %v351 = vld [vmem:[%s47 + $0x40] sm:$0xff]
    %v352 = vld [vmem:[%s47 + $0x48] sm:$0xff]
    %v353 = vld [vmem:[%s47 + $0x50] sm:$0xff]
    %v354 = vld [vmem:[%s47 + $0x58] sm:$0xff]
    %v355 = vld [vmem:[%s47 + $0x60] sm:$0xff]
    %v356 = vld [vmem:[%s47 + $0x68] sm:$0xff]
    %v357 = vld [vmem:[%s47 + $0x70] sm:$0xff]
    %v358 = vld [vmem:[%s47 + $0x78] sm:$0xff]
    %v359 = vld [vmem:[#allocation4] sm:$0xff]
    %v360 = vld [vmem:[#allocation4 + $0x8] sm:$0xff]
    %v361 = vld [vmem:[#allocation4 + $0x10] sm:$0xff]
    %v362 = vld [vmem:[#allocation4 + $0x18] sm:$0xff]
    %v363 = vld [vmem:[#allocation4 + $0x20] sm:$0xff]
    %v364 = vld [vmem:[#allocation4 + $0x28] sm:$0xff]
    %v365 = vld [vmem:[#allocation4 + $0x30] sm:$0xff]
    %v366 = vld [vmem:[#allocation4 + $0x38] sm:$0xff]
    %v367 = vld [vmem:[#allocation4 + $0x40] sm:$0xff]
    %v368 = vld [vmem:[#allocation4 + $0x48] sm:$0xff]
    %v369 = vld [vmem:[#allocation4 + $0x50] sm:$0xff]
    %v370 = vld [vmem:[#allocation4 + $0x58] sm:$0xff]
    %v371 = vld [vmem:[#allocation4 + $0x60] sm:$0xff]
    %v372 = vld [vmem:[#allocation4 + $0x68] sm:$0xff]
    %v373 = vld [vmem:[#allocation4 + $0x70] sm:$0xff]
    %v374 = vld [vmem:[#allocation4 + $0x78] sm:$0xff]
    %v376 = vsel %vm117, %v343, 0
    %v379 = vsel %vm117, %v344, 0
    %v382 = vsel %vm117, %v345, 0
    %v385 = vsel %vm117, %v346, 0
    %v388 = vsel %vm117, %v347, 0
    %v391 = vsel %vm117, %v348, 0
    %v394 = vsel %vm117, %v349, 0
    %v397 = vsel %vm117, %v350, 0
    %v400 = vsel %vm117, %v351, 0
    %v403 = vsel %vm117, %v352, 0
    %v406 = vsel %vm117, %v353, 0
    %v409 = vsel %vm117, %v354, 0
    %v412 = vsel %vm117, %v355, 0
    %v415 = vsel %vm117, %v356, 0
    %v418 = vsel %vm117, %v357, 0
    %v421 = vsel %vm117, %v358, 0
    %423 = vmatprep.subr.mxu0 0.0
    %424 = vmatpush1.xpose.msra.mxu0 %v376
    %425 = vmatprep.subr.mxu0 0.0
    %426 = vmatpush1.xpose.msra.mxu0 %v379
    %427 = vmatprep.subr.mxu0 0.0
    %428 = vmatpush1.xpose.msra.mxu0 %v382
    %429 = vmatprep.subr.mxu0 0.0
    %430 = vmatpush1.xpose.msra.mxu0 %v385
    %431 = vmatprep.subr.mxu0 0.0
    %432 = vmatpush1.xpose.msra.mxu0 %v388
    %433 = vmatprep.subr.mxu0 0.0
    %434 = vmatpush1.xpose.msra.mxu0 %v391
    %435 = vmatprep.subr.mxu0 0.0
    %436 = vmatpush1.xpose.msra.mxu0 %v394
    %437 = vmatprep.subr.mxu0 0.0
    %438 = vmatpush1.xpose.msra.mxu0 %v397
    %439 = vmatprep.subr.mxu0 0.0
    %440 = vmatpush1.xpose.msra.mxu0 %v400
    %441 = vmatprep.subr.mxu0 0.0
    %442 = vmatpush1.xpose.msra.mxu0 %v403
    %443 = vmatprep.subr.mxu0 0.0
    %444 = vmatpush1.xpose.msra.mxu0 %v406
    %445 = vmatprep.subr.mxu0 0.0
    %446 = vmatpush1.xpose.msra.mxu0 %v409
    %447 = vmatprep.subr.mxu0 0.0
    %448 = vmatpush1.xpose.msra.mxu0 %v412
    %449 = vmatprep.subr.mxu0 0.0
    %450 = vmatpush1.xpose.msra.mxu0 %v415
    %451 = vmatprep.subr.mxu0 0.0
    %452 = vmatpush1.xpose.msra.mxu0 %v418
    %453 = vmatprep.subr.mxu0 0.0
    %454 = vmatpush1.xpose.msra.mxu0 %v421
    %455 = vmatprep.subr.mxu0 0.0
    %456 = vmatpush1.xpose.msra.mxu0 0.0
    %457 = vmatprep.subr.mxu0 0.0
    %458 = vmatpush1.xpose.msra.mxu0 0.0
    %459 = vmatprep.subr.mxu0 0.0
    %460 = vmatpush1.xpose.msra.mxu0 0.0
    %461 = vmatprep.subr.mxu0 0.0
    %462 = vmatpush1.xpose.msra.mxu0 0.0
    %463 = vmatprep.subr.mxu0 0.0
    %464 = vmatpush1.xpose.msra.mxu0 0.0
    %465 = vmatprep.subr.mxu0 0.0
    %466 = vmatpush1.xpose.msra.mxu0 0.0
    %467 = vmatprep.subr.mxu0 0.0
    %468 = vmatpush1.xpose.msra.mxu0 0.0
    %469 = vmatprep.subr.mxu0 0.0
    %470 = vmatpush1.xpose.msra.mxu0 0.0
    %471 = vmatprep.subr.mxu0 0.0
    %472 = vmatpush1.xpose.msra.mxu0 0.0
    %473 = vmatprep.subr.mxu0 0.0
    %474 = vmatpush1.xpose.msra.mxu0 0.0
    %475 = vmatprep.subr.mxu0 0.0
    %476 = vmatpush1.xpose.msra.mxu0 0.0
    %477 = vmatprep.subr.mxu0 0.0
    %478 = vmatpush1.xpose.msra.mxu0 0.0
    %479 = vmatprep.subr.mxu0 0.0
    %480 = vmatpush1.xpose.msra.mxu0 0.0
    %481 = vmatprep.subr.mxu0 0.0
    %482 = vmatpush1.xpose.msra.mxu0 0.0
    %483 = vmatprep.subr.mxu0 0.0
    %484 = vmatpush1.xpose.msra.mxu0 0.0
    %485 = vmatprep.subr.mxu0 0.0
    %486 = vmatpush1.xpose.msra.mxu0 0.0
    %487 = vmatprep.mubr.f32.mxu0 0.0
    %488 = vmatmul.mubr.f32.gmra.mrb[0].mxu0 %v376
    %v489 = vpop.f32.mrb[0].mxu0
    %v490 = vadd.f32 0.0, %v489
    %v491 = vpop.f32.mrb[0].mxu0
    %492 = vmatprep.mubr.f32.mxu0 0.0
    %493 = vmatmul.mubr.f32.gmra.mrb[0].mxu0 %v379
    %v494 = vpop.f32.mrb[0].mxu0
    %v495 = vadd.f32 0.0, %v494
    %v496 = vpop.f32.mrb[0].mxu0
    %497 = vmatprep.mubr.f32.mxu0 0.0
    %498 = vmatmul.mubr.f32.gmra.mrb[0].mxu0 %v382
    %v499 = vpop.f32.mrb[0].mxu0
    %v500 = vadd.f32 0.0, %v499
    %v501 = vpop.f32.mrb[0].mxu0
    %502 = vmatprep.mubr.f32.mxu0 0.0
    %503 = vmatmul.mubr.f32.gmra.mrb[0].mxu0 %v385
    %v504 = vpop.f32.mrb[0].mxu0
    %v505 = vadd.f32 0.0, %v504
    %v506 = vpop.f32.mrb[0].mxu0
    %507 = vmatprep.mubr.f32.mxu0 0.0
    %508 = vmatmul.mubr.f32.gmra.mrb[0].mxu0 %v388
    %v509 = vpop.f32.mrb[0].mxu0
    %v510 = vadd.f32 0.0, %v509
    %v511 = vpop.f32.mrb[0].mxu0
    %512 = vmatprep.mubr.f32.mxu0 0.0
    %513 = vmatmul.mubr.f32.gmra.mrb[0].mxu0 %v391
    %v514 = vpop.f32.mrb[0].mxu0
    %v515 = vadd.f32 0.0, %v514
    %v516 = vpop.f32.mrb[0].mxu0
    %517 = vmatprep.mubr.f32.mxu0 0.0
    %518 = vmatmul.mubr.f32.gmra.mrb[0].mxu0 %v394
    %v519 = vpop.f32.mrb[0].mxu0
    %v520 = vadd.f32 0.0, %v519
    %v521 = vpop.f32.mrb[0].mxu0
    %522 = vmatprep.mubr.f32.mxu0 0.0
    %523 = vmatmul.mubr.f32.gmra.mrb[0].mxu0 %v397
    %v524 = vpop.f32.mrb[0].mxu0
    %v525 = vadd.f32 0.0, %v524
    %v526 = vpop.f32.mrb[0].mxu0
    %527 = vmatprep.mubr.f32.mxu0 0.0
    %528 = vmatmul.mubr.f32.gmra.mrb[0].mxu0 %v400
    %v529 = vpop.f32.mrb[0].mxu0
    %v530 = vadd.f32 0.0, %v529
    %v531 = vpop.f32.mrb[0].mxu0
    %532 = vmatprep.mubr.f32.mxu0 0.0
    %533 = vmatmul.mubr.f32.gmra.mrb[0].mxu0 %v403
    %v534 = vpop.f32.mrb[0].mxu0
    %v535 = vadd.f32 0.0, %v534
    %v536 = vpop.f32.mrb[0].mxu0
    %537 = vmatprep.mubr.f32.mxu0 0.0
    %538 = vmatmul.mubr.f32.gmra.mrb[0].mxu0 %v406
    %v539 = vpop.f32.mrb[0].mxu0
    %v540 = vadd.f32 0.0, %v539
    %v541 = vpop.f32.mrb[0].mxu0
    %542 = vmatprep.mubr.f32.mxu0 0.0
    %543 = vmatmul.mubr.f32.gmra.mrb[0].mxu0 %v409
    %v544 = vpop.f32.mrb[0].mxu0
    %v545 = vadd.f32 0.0, %v544
    %v546 = vpop.f32.mrb[0].mxu0
    %547 = vmatprep.mubr.f32.mxu0 0.0
    %548 = vmatmul.mubr.f32.gmra.mrb[0].mxu0 %v412
    %v549 = vpop.f32.mrb[0].mxu0
    %v550 = vadd.f32 0.0, %v549
    %v551 = vpop.f32.mrb[0].mxu0
    %552 = vmatprep.mubr.f32.mxu0 0.0
    %553 = vmatmul.mubr.f32.gmra.mrb[0].mxu0 %v415
    %v554 = vpop.f32.mrb[0].mxu0
    %v555 = vadd.f32 0.0, %v554
    %v556 = vpop.f32.mrb[0].mxu0
    %557 = vmatprep.mubr.f32.mxu0 0.0
    %558 = vmatmul.mubr.f32.gmra.mrb[0].mxu0 %v418
    %v559 = vpop.f32.mrb[0].mxu0
    %v560 = vadd.f32 0.0, %v559
    %v561 = vpop.f32.mrb[0].mxu0
    %562 = vmatprep.mubr.f32.mxu0 0.0
    %563 = vmatmul.mubr.f32.gmra.mrb[0].mxu0 %v421
    %v564 = vpop.f32.mrb[0].mxu0
    %v565 = vadd.f32 0.0, %v564
    %v566 = vpop.f32.mrb[0].mxu0
    %567 = vdwg.mxu0
    %v568 = vadd.f32 %v359, %v490
    %v569 = vadd.f32 %v360, %v495
    %v570 = vadd.f32 %v361, %v500
    %v571 = vadd.f32 %v362, %v505
    %v572 = vadd.f32 %v363, %v510
    %v573 = vadd.f32 %v364, %v515
    %v574 = vadd.f32 %v365, %v520
    %v575 = vadd.f32 %v366, %v525
    %v576 = vadd.f32 %v367, %v530
    %v577 = vadd.f32 %v368, %v535
    %v578 = vadd.f32 %v369, %v540
    %v579 = vadd.f32 %v370, %v545
    %v580 = vadd.f32 %v371, %v550
    %v581 = vadd.f32 %v372, %v555
    %v582 = vadd.f32 %v373, %v560
    %v583 = vadd.f32 %v374, %v565
    %584 = vst [vmem:[#allocation4] sm:$0xff] %v568
    %585 = vst [vmem:[#allocation4 + $0x8] sm:$0xff] %v569
    %586 = vst [vmem:[#allocation4 + $0x10] sm:$0xff] %v570
    %587 = vst [vmem:[#allocation4 + $0x18] sm:$0xff] %v571
    %588 = vst [vmem:[#allocation4 + $0x20] sm:$0xff] %v572
    %589 = vst [vmem:[#allocation4 + $0x28] sm:$0xff] %v573
    %590 = vst [vmem:[#allocation4 + $0x30] sm:$0xff] %v574
    %591 = vst [vmem:[#allocation4 + $0x38] sm:$0xff] %v575
    %592 = vst [vmem:[#allocation4 + $0x40] sm:$0xff] %v576
    %593 = vst [vmem:[#allocation4 + $0x48] sm:$0xff] %v577
    %594 = vst [vmem:[#allocation4 + $0x50] sm:$0xff] %v578
    %595 = vst [vmem:[#allocation4 + $0x58] sm:$0xff] %v579
    %596 = vst [vmem:[#allocation4 + $0x60] sm:$0xff] %v580
    %597 = vst [vmem:[#allocation4 + $0x68] sm:$0xff] %v581
    %598 = vst [vmem:[#allocation4 + $0x70] sm:$0xff] %v582
    %599 = vst [vmem:[#allocation4 + $0x78] sm:$0xff] %v583
    // Predicated region
    $region14: #{tpu_custom_call.1} parent=1 // pred_check
      _
    $region15: #{tpu_custom_call.1} parent=1 // pred_check_branch
      %601 = sbr.rel (0) target = $region17
    $region16: #{tpu_custom_call.1} parent=1 // pred_region
      %s603 = ssub.s32 2048, 2048
      %604 = vsyncadd [#allocation3], %s603
      %s605 = sshll.u32 [#allocation2], 4
      %s606 = int_to_ptr.vmem [resolvable:$true] %s605
      %611 = dma.vmem_to_hbm [thread:$0]  %s606, 2048, %s2, [#allocation3], 128, 128, 8
    $region17: #{tpu_custom_call.1} parent=1 // pred_fallthru
      _
    // Predicated region
    $region18: #{tpu_custom_call.1} parent=1 // pred_check
      _
    $region19: #{tpu_custom_call.1} parent=1 // pred_check_branch
      %613 = sbr.rel (0) target = $region21
    $region20: #{tpu_custom_call.1} parent=1 // pred_region
      %s615 = ssub.s32 2048, 2048
      %616 = vsyncadd [#allocation5], %s615
      %s617 = sshll.u32 [#allocation4], 4
      %s618 = int_to_ptr.vmem [resolvable:$true] %s617
      %623 = dma.vmem_to_hbm [thread:$0]  %s618, 2048, %s3, [#allocation5], 128, 128, 8
    $region21: #{tpu_custom_call.1} parent=1 // pred_fallthru
      _
    // Predicated region
    $region22: #{tpu_custom_call.1} parent=1 // pred_check
      _
    $region23: #{tpu_custom_call.1} parent=1 // pred_check_branch
      %625 = sbr.rel (0) target = $region25
    $region24: #{tpu_custom_call.1} parent=1 // pred_region
      %626 = dma.done [#allocation3], 2048
    $region25: #{tpu_custom_call.1} parent=1 // pred_fallthru
      _
    // Predicated region
    $region26: #{tpu_custom_call.1} parent=1 // pred_check
      _
    $region27: #{tpu_custom_call.1} parent=1 // pred_check_branch
      %628 = sbr.rel (0) target = $region29
    $region28: #{tpu_custom_call.1} parent=1 // pred_region
      %629 = dma.done [#allocation5], 2048
    $region29: #{tpu_custom_call.1} parent=1 // pred_fallthru
      _
    %630 = vsyncpa [#allocation3], 1
    %631 = vsyncpa [#allocation5], 1

</llo_original>
